<compile_context>
chip_gen: v5e
topology: v5e:2x2
jax: 0.10.0
libtpu: 0.0.40
codegen_flags: <defaults>
</compile_context>

<pallas_src>
import functools

import jax
import jax.numpy as jnp
from jax.experimental import pallas as pl
from jax.experimental.pallas import tpu as pltpu

NEG_SLOPE = 0.2      # LeakyReLU slope used everywhere in the module
GN_EPS = 1e-5        # PyTorch GroupNorm default eps
BIG = 1e30           # "+inf" sentinel for cross-batch distance masking


def _leaky(x):
    return jnp.where(x >= 0, x, NEG_SLOPE * x)


def _round_up(n, m):
    return ((n + m - 1) // m) * m


def _pad_axis(a, axis, size, value=0):
    pad = size - a.shape[axis]
    if pad <= 0:
        return a
    widths = [(0, 0)] * a.ndim
    widths[axis] = (0, pad)
    return jnp.pad(a, widths, constant_values=value)


# ---------------------------------------------------------------------------
# Kernel 1: batch-masked pairwise squared distances (KeOps LazyTensor + ranges)
# Tiled over rows of x and columns of y; both grid axes are parallel.
# ---------------------------------------------------------------------------
def _pairwise_dist_kernel(x_ref, yt_ref, xb_ref, yb_ref, out_ref):
    # x_ref: (TN, 3), yt_ref: (3, TM), xb_ref: (TN, 1) i32, yb_ref: (1, TM) i32
    d2 = jnp.zeros(out_ref.shape, jnp.float32)
    for c in range(3):                                    # unrolled over xyz coords
        diff = x_ref[:, c:c + 1] - yt_ref[c:c + 1, :]     # (TN, TM) broadcast
        d2 = d2 + diff * diff
    same = xb_ref[...] == yb_ref[...]                     # block-diagonal batch mask
    out_ref[...] = jnp.where(same, d2, jnp.float32(BIG))


def pairwise_sq_dists(x, y, x_batch, y_batch, *, tile_n=512, tile_m=1024):
    N, M = x.shape[0], y.shape[0]
    TN = min(tile_n, _round_up(N, 8))
    TM = min(tile_m, _round_up(M, 128))
    Np_, Mp_ = _round_up(N, TN), _round_up(M, TM)

    xf = _pad_axis(x.astype(jnp.float32), 0, Np_)
    yf = _pad_axis(y.astype(jnp.float32), 0, Mp_)
    xb = _pad_axis(x_batch.astype(jnp.int32), 0, Np_, value=-1).reshape(Np_, 1)
    yb = _pad_axis(y_batch.astype(jnp.int32), 0, Mp_, value=-2).reshape(1, Mp_)
    yt = jnp.transpose(yf)                                # (3, Mp_)

    d = pl.pallas_call(
        _pairwise_dist_kernel,
        out_shape=jax.ShapeDtypeStruct((Np_, Mp_), jnp.float32),
        grid=(Np_ // TN, Mp_ // TM),
        in_specs=[
            pl.BlockSpec((TN, 3), lambda i, j: (i, 0)),
            pl.BlockSpec((3, TM), lambda i, j: (0, j)),
            pl.BlockSpec((TN, 1), lambda i, j: (i, 0)),
            pl.BlockSpec((1, TM), lambda i, j: (0, j)),
        ],
        out_specs=pl.BlockSpec((TN, TM), lambda i, j: (i, j)),
        compiler_params=pltpu.CompilerParams(
            dimension_semantics=("parallel", "parallel"),
            vmem_limit_bytes=32 * 1024 * 1024,
        ),
    )(xf, yt, xb, yb)
    return d[:N, :M]


def knn_nodes(x, y, x_batch, y_batch, k):
    d = pairwise_sq_dists(x, y, x_batch, y_batch)
    # TODO(synk): argKmin selection stays in JAX (lax.top_k); fusing a running
    # per-row k-min over M-tiles into the distance kernel would remove the (N, M)
    # HBM round trip, but there is no clean Pallas/TPU sort primitive.
    # NOTE: like the PyTorch/KeOps original, this assumes every batch element has
    # at least k members; otherwise cross-batch sentinels get selected.
    _, idx = jax.lax.top_k(-d, k)                          # k smallest distances
    x_ik = y[idx]                                          # (N, k, 3) gather (glue)
    dists = jnp.sum((x[:, None, :] - x_ik) ** 2, axis=-1)  # exact, matches PyTorch
    return idx, dists


# ---------------------------------------------------------------------------
# Kernel 2: one message-passing layer, tiled over points.
# ---------------------------------------------------------------------------
def _mp_layer_kernel(self_ref, neigh_ref, dist_ref,
                     w1s_ref, w1n_ref, w1d_ref, b1_ref,
                     w2_ref, b2_ref, gw_ref, gb_ref, gsel_ref, out_ref):
    k = neigh_ref.shape[0]
    s = self_ref[...]                                               # (T, D)
    w1n = w1n_ref[...]
    w1d = w1d_ref[...]

    # self contribution of the first Linear: computed once per point (no repeat)
    hself = jnp.dot(s, w1s_ref[...],
                    preferred_element_type=jnp.float32) + b1_ref[...]   # (T, Cp)

    hsum = jnp.zeros_like(hself)
    for j in range(k):                       # k is small & static -> unrolled;
        # independent (T,D)@(D,Cp) matmuls get pipelined by the LLO scheduler
        h = (hself
             + jnp.dot(neigh_ref[j], w1n, preferred_element_type=jnp.float32)
             + dist_ref[j] * w1d)                                    # (T, Cp)
        hsum = hsum + _leaky(h)

    # second Linear hoisted past the neighbor sum (bias becomes k * b2)
    msum = jnp.dot(hsum, w2_ref[...],
                   preferred_element_type=jnp.float32) + k * b2_ref[...]  # (T, D)

    # GroupNorm(2, D): group mean / biased variance via group-averaging matmul
    gsel = gsel_ref[...]                                             # (D, D)
    mu = jnp.dot(msum, gsel, preferred_element_type=jnp.float32)
    xc = msum - mu
    var = jnp.dot(xc * xc, gsel, preferred_element_type=jnp.float32)
    gn = xc * jax.lax.rsqrt(var + GN_EPS) * gw_ref[...] + gb_ref[...]

    out_ref[...] = s + _leaky(gn)


def mp_layer(self_feat, neigh_knd, dist_knd, lp, *, max_tile=512):
    """One MP layer. self_feat: (Np, D); neigh_knd: (k, Np, D); dist_knd: (k, Np, 1)."""
    Np, D = self_feat.shape
    k = neigh_knd.shape[0]
    C = 2 * D + 1
    Cp = _round_up(C, 128)                     # lane-dense hidden width

    W1, b1, W2, b2, gw, gb = (lp[n] for n in ("W1", "b1", "W2", "b2", "gw", "gb"))

    def padc(a):                               # zero-pad hidden (lane) dim to Cp
        return jnp.pad(a, ((0, 0), (0, Cp - a.shape[1])))

    w1s = padc(W1[:D])                         # (D, Cp) rows acting on self feats
    w1n = padc(W1[D:2 * D])                    # (D, Cp) rows acting on neighbor feats
    w1d = padc(W1[2 * D:2 * D + 1])            # (1, Cp) row acting on the distance
    b1p = padc(b1)                             # (1, Cp)
    w2p = jnp.pad(W2, ((0, Cp - C), (0, 0)))   # (Cp, D), padded rows are zero

    half = D // 2                              # GroupNorm(2, D) group-average matrix
    grp = jnp.arange(D) // half
    gsel = (grp[:, None] == grp[None, :]).astype(jnp.float32) / half   # (D, D)

    T = min(max_tile, _round_up(Np, 8))
    Np_pad = _round_up(Np, T)
    sp = _pad_axis(self_feat.astype(jnp.float32), 0, Np_pad)
    nb = _pad_axis(neigh_knd.astype(jnp.float32), 1, Np_pad)
    dp = _pad_axis(dist_knd.astype(jnp.float32), 1, Np_pad)

    out = pl.pallas_call(
        _mp_layer_kernel,
        out_shape=jax.ShapeDtypeStruct((Np_pad, D), jnp.float32),
        grid=(Np_pad // T,),
        in_specs=[
            pl.BlockSpec((T, D), lambda i: (i, 0)),          # self features
            pl.BlockSpec((k, T, D), lambda i: (0, i, 0)),    # gathered neighbors
            pl.BlockSpec((k, T, 1), lambda i: (0, i, 0)),    # squared distances
            pl.BlockSpec((D, Cp), lambda i: (0, 0)),         # W1 (self rows)
            pl.BlockSpec((D, Cp), lambda i: (0, 0)),         # W1 (neighbor rows)
            pl.BlockSpec((1, Cp), lambda i: (0, 0)),         # W1 (distance row)
            pl.BlockSpec((1, Cp), lambda i: (0, 0)),         # b1
            pl.BlockSpec((Cp, D), lambda i: (0, 0)),         # W2
            pl.BlockSpec((1, D), lambda i: (0, 0)),          # b2
            pl.BlockSpec((1, D), lambda i: (0, 0)),          # GN gamma
            pl.BlockSpec((1, D), lambda i: (0, 0)),          # GN beta
            pl.BlockSpec((D, D), lambda i: (0, 0)),          # group selector
        ],
        out_specs=pl.BlockSpec((T, D), lambda i: (i, 0)),
        compiler_params=pltpu.CompilerParams(
            dimension_semantics=("parallel",),
            vmem_limit_bytes=32 * 1024 * 1024,
        ),
    )(sp, nb, dp, w1s, w1n, w1d, b1p, w2p, b2, gw, gb, gsel)
    return out[:Np]


# ---------------------------------------------------------------------------
# Res_Res_embedding_MP.forward
# ---------------------------------------------------------------------------
@functools.partial(jax.jit, static_argnames=("k_plus_self",))
def res_res_embedding_mp_forward(layers, x, y, y_restypes, x_batch, y_batch,
                                 *, k_plus_self):
    idx, dists = knn_nodes(x, y, x_batch, y_batch, k_plus_self)
    idx = idx[:, 1:]            # drop the self neighbor (distance 0, returned first)
    dists = dists[:, 1:]
    dist_knd = jnp.transpose(dists).astype(jnp.float32)[:, :, None]   # (k, N, 1)

    out = y_restypes.astype(jnp.float32)
    for lp in layers:
        # TODO(synk): neighbor row gather stays in JAX glue; an in-kernel gather
        # (scalar-prefetch idx + per-tile DMA from an HBM feature table) would
        # avoid one (N*k, D) HBM round trip per layer and allow fusing all layers.
        neigh_knd = out[idx.T]                              # (k, N, D) neighbor-major
        out = mp_layer(out, neigh_knd, dist_knd, lp)
    return out


# ---------------------------------------------------------------------------
# Pure-JAX reference (mirrors the PyTorch module) — verification only.
# ---------------------------------------------------------------------------
def _reference_mp_stack(layers, y_feat, idx, dists):
    Np, D = y_feat.shape
    k = idx.shape[1]
    out = y_feat.astype(jnp.float32)
    for lp in layers:
        feats = out[idx.reshape(-1)]                                   # (Np*k, D)
        feats = jnp.concatenate([feats, dists.reshape(-1, 1)], axis=1)
        feats = feats.reshape(Np, k, D + 1)
        selfr = jnp.broadcast_to(out[:, None, :], (Np, k, D))
        feats = jnp.concatenate([selfr, feats], axis=-1)               # (Np, k, 2D+1)
        h = _leaky(feats @ lp["W1"] + lp["b1"])
        msg = (h @ lp["W2"] + lp["b2"]).sum(axis=1)                    # (Np, D)
        g = msg.reshape(Np, 2, D // 2)
        mu = g.mean(axis=-1, keepdims=True)
        var = ((g - mu) ** 2).mean(axis=-1, keepdims=True)
        gn = ((g - mu) * jax.lax.rsqrt(var + GN_EPS)).reshape(Np, D)
        gn = gn * lp["gw"] + lp["gb"]
        out = out + _leaky(gn)
    return out


# ---------------------------------------------------------------------------
# Deterministic parameter initialization (matches module's shapes)
# ---------------------------------------------------------------------------
def init_params(key, D, n_layers=3, max_aa_types=22):
    C = 2 * D + 1
    keys = iter(jax.random.split(key, 4 * n_layers + 1))

    def linear(fan_in, fan_out):
        lim = 1.0 / (fan_in ** 0.5)
        w = jax.random.uniform(next(keys), (fan_in, fan_out), jnp.float32, -lim, lim)
        b = jax.random.uniform(next(keys), (1, fan_out), jnp.float32, -lim, lim)
        return w, b

    layers = []
    for _ in range(n_layers):
        W1, b1 = linear(C, C)
        W2, b2 = linear(C, D)
        layers.append(dict(W1=W1, b1=b1, W2=W2, b2=b2,
                           gw=jnp.ones((1, D), jnp.float32),
                           gb=jnp.zeros((1, D), jnp.float32)))
    res_embed = jax.random.normal(next(keys), (max_aa_types, D), jnp.float32)
    return dict(layers=layers, res_embed=res_embed)


if __name__ == "__main__":
    D = 16                  # cfg.res_dims
    K_RES_RES = 4           # cfg.nearest_neighbors.res_res
    K = K_RES_RES + 1       # module uses k = cfg.nearest_neighbors.res_res + 1
    M = 24                  # residues: 12 per batch element, 2 batch elements

    key = jax.random.PRNGKey(0)
    k_par, k_xyz, k_types = jax.random.split(key, 3)

    params = init_params(k_par, D)
    resxyz = jax.random.normal(k_xyz, (M, 3), jnp.float32) * 3.0
    restypes = jax.random.randint(k_types, (M,), 0, 22, dtype=jnp.int32)
    batch_res = jnp.concatenate([jnp.zeros(M // 2, jnp.int32),
                                 jnp.ones(M - M // 2, jnp.int32)])
    y_restypes = params["res_embed"][restypes]          # (M, D) residue features

    out = res_res_embedding_mp_forward(params["layers"], resxyz, resxyz,
                                       y_restypes, batch_res, batch_res,
                                       k_plus_self=K)
    out = jax.block_until_ready(out)
    assert out.shape == (M, D)
    assert bool(jnp.all(jnp.isfinite(out)))

    # --- verification against a pure-JAX reference ---
    d_pl = pairwise_sq_dists(resxyz, resxyz, batch_res, batch_res)
    d_ref = jnp.sum((resxyz[:, None, :] - resxyz[None, :, :]) ** 2, axis=-1)
    d_ref = jnp.where(batch_res[:, None] == batch_res[None, :], d_ref,
                      jnp.float32(BIG))
    assert jnp.allclose(d_pl, d_ref, rtol=1e-4, atol=1e-3)

    idx, dists = knn_nodes(resxyz, resxyz, batch_res, batch_res, K)
    ref = _reference_mp_stack(params["layers"], y_restypes,
                              idx[:, 1:], dists[:, 1:])
    err = float(jnp.max(jnp.abs(out - ref)))
    assert err < 1e-3, f"mismatch vs reference: {err}"

    print("KERNEL_OK")
</pallas_src>

<mosaic_0001>
module attributes {stable_mosaic.version = 11 : i64} {
  func.func @_pairwise_dist_kernel(%arg0: i32, %arg1: i32, %arg2: memref<24x3xf32, #tpu.memory_space<vmem>>, %arg3: memref<3x128xf32, #tpu.memory_space<vmem>>, %arg4: memref<24x1xi32, #tpu.memory_space<vmem>>, %arg5: memref<1x128xi32, #tpu.memory_space<vmem>>, %arg6: memref<24x128xf32, #tpu.memory_space<vmem>>) attributes {dimension_semantics = [#tpu.dimension_semantics<parallel>, #tpu.dimension_semantics<parallel>], iteration_bounds = array<i64: 1, 1>, scalar_prefetch = 0 : i64, scratch_operands = 0 : i64, tpu.core_type = #tpu.core_type<tc>, window_params = [{transform_indices = @transform_0, window_bounds = array<i64: 24, 3>}, {transform_indices = @transform_1, window_bounds = array<i64: 3, 128>}, {transform_indices = @transform_2, window_bounds = array<i64: 24, 1>}, {transform_indices = @transform_3, window_bounds = array<i64: 1, 128>}, {transform_indices = @transform_4, window_bounds = array<i64: 24, 128>}]} {
    %cst = arith.constant 0.000000e+00 : f32
    %0 = vector.broadcast %cst : f32 to vector<24x128xf32>
    %c0 = arith.constant 0 : index
    %c0_0 = arith.constant 0 : index
    %1 = vector.load %arg2[%c0, %c0_0] : memref<24x3xf32, #tpu.memory_space<vmem>>, vector<24x1xf32>
    %c0_1 = arith.constant 0 : index
    %c0_2 = arith.constant 0 : index
    %2 = vector.load %arg3[%c0_1, %c0_2] : memref<3x128xf32, #tpu.memory_space<vmem>>, vector<1x128xf32>
    %3 = vector.broadcast %1 : vector<24x1xf32> to vector<24x128xf32>
    %4 = vector.broadcast %2 : vector<1x128xf32> to vector<24x128xf32>
    %5 = arith.subf %3, %4 : vector<24x128xf32>
    %6 = arith.mulf %5, %5 : vector<24x128xf32>
    %7 = arith.addf %0, %6 : vector<24x128xf32>
    %c0_3 = arith.constant 0 : index
    %c1 = arith.constant 1 : index
    %8 = vector.load %arg2[%c0_3, %c1] : memref<24x3xf32, #tpu.memory_space<vmem>>, vector<24x1xf32>
    %c1_4 = arith.constant 1 : index
    %c0_5 = arith.constant 0 : index
    %9 = vector.load %arg3[%c1_4, %c0_5] : memref<3x128xf32, #tpu.memory_space<vmem>>, vector<1x128xf32>
    %10 = vector.broadcast %8 : vector<24x1xf32> to vector<24x128xf32>
    %11 = vector.broadcast %9 : vector<1x128xf32> to vector<24x128xf32>
    %12 = arith.subf %10, %11 : vector<24x128xf32>
    %13 = arith.mulf %12, %12 : vector<24x128xf32>
    %14 = arith.addf %7, %13 : vector<24x128xf32>
    %c0_6 = arith.constant 0 : index
    %c2 = arith.constant 2 : index
    %15 = vector.load %arg2[%c0_6, %c2] : memref<24x3xf32, #tpu.memory_space<vmem>>, vector<24x1xf32>
    %c2_7 = arith.constant 2 : index
    %c0_8 = arith.constant 0 : index
    %16 = vector.load %arg3[%c2_7, %c0_8] : memref<3x128xf32, #tpu.memory_space<vmem>>, vector<1x128xf32>
    %17 = vector.broadcast %15 : vector<24x1xf32> to vector<24x128xf32>
    %18 = vector.broadcast %16 : vector<1x128xf32> to vector<24x128xf32>
    %19 = arith.subf %17, %18 : vector<24x128xf32>
    %20 = arith.mulf %19, %19 : vector<24x128xf32>
    %21 = arith.addf %14, %20 : vector<24x128xf32>
    %c0_9 = arith.constant 0 : index
    %c0_10 = arith.constant 0 : index
    %22 = vector.load %arg4[%c0_9, %c0_10] : memref<24x1xi32, #tpu.memory_space<vmem>>, vector<24x1xi32>
    %c0_11 = arith.constant 0 : index
    %c0_12 = arith.constant 0 : index
    %23 = vector.load %arg5[%c0_11, %c0_12] : memref<1x128xi32, #tpu.memory_space<vmem>>, vector<1x128xi32>
    %24 = vector.broadcast %22 : vector<24x1xi32> to vector<24x128xi32>
    %25 = vector.broadcast %23 : vector<1x128xi32> to vector<24x128xi32>
    %26 = arith.cmpi eq, %24, %25 : vector<24x128xi32>
    %cst_13 = arith.constant 1.000000e+30 : f32
    %27 = vector.broadcast %cst_13 : f32 to vector<24x128xf32>
    %28 = arith.select %26, %21, %27 : vector<24x128xi1>, vector<24x128xf32>
    %c0_14 = arith.constant 0 : index
    %c0_15 = arith.constant 0 : index
    %29 = vector.load %arg6[%c0_14, %c0_15] : memref<24x128xf32, #tpu.memory_space<vmem>>, vector<24x128xf32>
    tpu.vector_store %arg6[%c0_14, %c0_15], %28 {strides = array<i32>} : memref<24x128xf32, #tpu.memory_space<vmem>>, vector<24x128xf32>,
    return
  }
  func.func @transform_0(%arg0: i32, %arg1: i32) -> (i32, i32) {
    %c0_i32 = arith.constant 0 : i32
    %c0_i32_0 = arith.constant 0 : i32
    return %arg0, %c0_i32 : i32, i32
  }
  func.func @transform_1(%arg0: i32, %arg1: i32) -> (i32, i32) {
    %c0_i32 = arith.constant 0 : i32
    %c0_i32_0 = arith.constant 0 : i32
    return %c0_i32, %arg1 : i32, i32
  }
  func.func @transform_2(%arg0: i32, %arg1: i32) -> (i32, i32) {
    %c0_i32 = arith.constant 0 : i32
    %c0_i32_0 = arith.constant 0 : i32
    return %arg0, %c0_i32 : i32, i32
  }
  func.func @transform_3(%arg0: i32, %arg1: i32) -> (i32, i32) {
    %c0_i32 = arith.constant 0 : i32
    %c0_i32_0 = arith.constant 0 : i32
    return %c0_i32, %arg1 : i32, i32
  }
  func.func @transform_4(%arg0: i32, %arg1: i32) -> (i32, i32) {
    %c0_i32 = arith.constant 0 : i32
    return %arg0, %arg1 : i32, i32
  }
}

module attributes {stable_mosaic.version = 11 : i64} {
  func.func @_mp_layer_kernel(%arg0: i32, %arg1: memref<24x16xf32, #tpu.memory_space<vmem>>, %arg2: memref<4x24x16xf32, #tpu.memory_space<vmem>>, %arg3: memref<4x24x1xf32, #tpu.memory_space<vmem>>, %arg4: memref<16x128xf32, #tpu.memory_space<vmem>>, %arg5: memref<16x128xf32, #tpu.memory_space<vmem>>, %arg6: memref<1x128xf32, #tpu.memory_space<vmem>>, %arg7: memref<1x128xf32, #tpu.memory_space<vmem>>, %arg8: memref<128x16xf32, #tpu.memory_space<vmem>>, %arg9: memref<1x16xf32, #tpu.memory_space<vmem>>, %arg10: memref<1x16xf32, #tpu.memory_space<vmem>>, %arg11: memref<1x16xf32, #tpu.memory_space<vmem>>, %arg12: memref<16x16xf32, #tpu.memory_space<vmem>>, %arg13: memref<24x16xf32, #tpu.memory_space<vmem>>) attributes {dimension_semantics = [#tpu.dimension_semantics<parallel>], iteration_bounds = array<i64: 1>, scalar_prefetch = 0 : i64, scratch_operands = 0 : i64, tpu.core_type = #tpu.core_type<tc>, window_params = [{transform_indices = @transform_0, window_bounds = array<i64: 24, 16>}, {transform_indices = @transform_1, window_bounds = array<i64: 4, 24, 16>}, {transform_indices = @transform_2, window_bounds = array<i64: 4, 24, 1>}, {pipeline_mode = #tpu.pipeline_mode<synchronous>, transform_indices = @transform_3, window_bounds = array<i64: 16, 128>}, {pipeline_mode = #tpu.pipeline_mode<synchronous>, transform_indices = @transform_4, window_bounds = array<i64: 16, 128>}, {pipeline_mode = #tpu.pipeline_mode<synchronous>, transform_indices = @transform_5, window_bounds = array<i64: 1, 128>}, {pipeline_mode = #tpu.pipeline_mode<synchronous>, transform_indices = @transform_6, window_bounds = array<i64: 1, 128>}, {pipeline_mode = #tpu.pipeline_mode<synchronous>, transform_indices = @transform_7, window_bounds = array<i64: 128, 16>}, {pipeline_mode = #tpu.pipeline_mode<synchronous>, transform_indices = @transform_8, window_bounds = array<i64: 1, 16>}, {pipeline_mode = #tpu.pipeline_mode<synchronous>, transform_indices = @transform_9, window_bounds = array<i64: 1, 16>}, {pipeline_mode = #tpu.pipeline_mode<synchronous>, transform_indices = @transform_10, window_bounds = array<i64: 1, 16>}, {pipeline_mode = #tpu.pipeline_mode<synchronous>, transform_indices = @transform_11, window_bounds = array<i64: 16, 16>}, {transform_indices = @transform_12, window_bounds = array<i64: 24, 16>}]} {
    %c0 = arith.constant 0 : index
    %c0_0 = arith.constant 0 : index
    %0 = vector.load %arg1[%c0, %c0_0] : memref<24x16xf32, #tpu.memory_space<vmem>>, vector<24x16xf32>
    %c0_1 = arith.constant 0 : index
    %c0_2 = arith.constant 0 : index
    %1 = vector.load %arg5[%c0_1, %c0_2] : memref<16x128xf32, #tpu.memory_space<vmem>>, vector<16x128xf32>
    %c0_3 = arith.constant 0 : index
    %c0_4 = arith.constant 0 : index
    %2 = vector.load %arg6[%c0_3, %c0_4] : memref<1x128xf32, #tpu.memory_space<vmem>>, vector<1x128xf32>
    %c0_5 = arith.constant 0 : index
    %c0_6 = arith.constant 0 : index
    %3 = vector.load %arg4[%c0_5, %c0_6] : memref<16x128xf32, #tpu.memory_space<vmem>>, vector<16x128xf32>
    %cst = arith.constant dense<0.000000e+00> : vector<24x128xf32>
    %4 = tpu.matmul %0, %3, %cst {dimension_numbers = #tpu.dot_dimension_numbers<[1], [0], [0], [1], [0, 0, 1, 1], [], []>} : vector<24x16xf32>, vector<16x128xf32>, vector<24x128xf32> -> vector<24x128xf32>
    %c0_7 = arith.constant 0 : index
    %c0_8 = arith.constant 0 : index
    %5 = vector.load %arg7[%c0_7, %c0_8] : memref<1x128xf32, #tpu.memory_space<vmem>>, vector<1x128xf32>
    %6 = vector.broadcast %5 : vector<1x128xf32> to vector<24x128xf32>
    %7 = arith.addf %4, %6 : vector<24x128xf32>
    %cst_9 = arith.constant 0.000000e+00 : f32
    %8 = vector.broadcast %cst_9 : f32 to vector<24x128xf32>
    %c0_10 = arith.constant 0 : index
    %c0_11 = arith.constant 0 : index
    %c0_12 = arith.constant 0 : index
    %9 = vector.load %arg2[%c0_10, %c0_11, %c0_12] : memref<4x24x16xf32, #tpu.memory_space<vmem>>, vector<1x24x16xf32>
    %10 = vector.shape_cast %9 : vector<1x24x16xf32> to vector<24x16xf32>
    %cst_13 = arith.constant dense<0.000000e+00> : vector<24x128xf32>
    %11 = tpu.matmul %10, %1, %cst_13 {dimension_numbers = #tpu.dot_dimension_numbers<[1], [0], [0], [1], [0, 0, 1, 1], [], []>} : vector<24x16xf32>, vector<16x128xf32>, vector<24x128xf32> -> vector<24x128xf32>
    %12 = arith.addf %7, %11 : vector<24x128xf32>
    %c0_14 = arith.constant 0 : index
    %c0_15 = arith.constant 0 : index
    %c0_16 = arith.constant 0 : index
    %13 = vector.load %arg3[%c0_14, %c0_15, %c0_16] : memref<4x24x1xf32, #tpu.memory_space<vmem>>, vector<1x24x1xf32>
    %14 = vector.shape_cast %13 : vector<1x24x1xf32> to vector<24x1xf32>
    %15 = vector.broadcast %14 : vector<24x1xf32> to vector<24x128xf32>
    %16 = vector.broadcast %2 : vector<1x128xf32> to vector<24x128xf32>
    %17 = arith.mulf %15, %16 : vector<24x128xf32>
    %18 = arith.addf %12, %17 : vector<24x128xf32>
    %cst_17 = arith.constant 0.000000e+00 : f32
    %19 = vector.broadcast %cst_17 : f32 to vector<24x128xf32>
    %20 = arith.cmpf oge, %18, %19 : vector<24x128xf32>
    %cst_18 = arith.constant 2.000000e-01 : f32
    %21 = vector.broadcast %cst_18 : f32 to vector<24x128xf32>
    %22 = arith.mulf %21, %18 : vector<24x128xf32>
    %23 = arith.select %20, %18, %22 : vector<24x128xi1>, vector<24x128xf32>
    %24 = arith.addf %8, %23 : vector<24x128xf32>
    %c1 = arith.constant 1 : index
    %c0_19 = arith.constant 0 : index
    %c0_20 = arith.constant 0 : index
    %25 = vector.load %arg2[%c1, %c0_19, %c0_20] : memref<4x24x16xf32, #tpu.memory_space<vmem>>, vector<1x24x16xf32>
    %26 = vector.shape_cast %25 : vector<1x24x16xf32> to vector<24x16xf32>
    %cst_21 = arith.constant dense<0.000000e+00> : vector<24x128xf32>
    %27 = tpu.matmul %26, %1, %cst_21 {dimension_numbers = #tpu.dot_dimension_numbers<[1], [0], [0], [1], [0, 0, 1, 1], [], []>} : vector<24x16xf32>, vector<16x128xf32>, vector<24x128xf32> -> vector<24x128xf32>
    %28 = arith.addf %7, %27 : vector<24x128xf32>
    %c1_22 = arith.constant 1 : index
    %c0_23 = arith.constant 0 : index
    %c0_24 = arith.constant 0 : index
    %29 = vector.load %arg3[%c1_22, %c0_23, %c0_24] : memref<4x24x1xf32, #tpu.memory_space<vmem>>, vector<1x24x1xf32>
    %30 = vector.shape_cast %29 : vector<1x24x1xf32> to vector<24x1xf32>
    %31 = vector.broadcast %30 : vector<24x1xf32> to vector<24x128xf32>
    %32 = vector.broadcast %2 : vector<1x128xf32> to vector<24x128xf32>
    %33 = arith.mulf %31, %32 : vector<24x128xf32>
    %34 = arith.addf %28, %33 : vector<24x128xf32>
    %cst_25 = arith.constant 0.000000e+00 : f32
    %35 = vector.broadcast %cst_25 : f32 to vector<24x128xf32>
    %36 = arith.cmpf oge, %34, %35 : vector<24x128xf32>
    %cst_26 = arith.constant 2.000000e-01 : f32
    %37 = vector.broadcast %cst_26 : f32 to vector<24x128xf32>
    %38 = arith.mulf %37, %34 : vector<24x128xf32>
    %39 = arith.select %36, %34, %38 : vector<24x128xi1>, vector<24x128xf32>
    %40 = arith.addf %24, %39 : vector<24x128xf32>
    %c2 = arith.constant 2 : index
    %c0_27 = arith.constant 0 : index
    %c0_28 = arith.constant 0 : index
    %41 = vector.load %arg2[%c2, %c0_27, %c0_28] : memref<4x24x16xf32, #tpu.memory_space<vmem>>, vector<1x24x16xf32>
    %42 = vector.shape_cast %41 : vector<1x24x16xf32> to vector<24x16xf32>
    %cst_29 = arith.constant dense<0.000000e+00> : vector<24x128xf32>
    %43 = tpu.matmul %42, %1, %cst_29 {dimension_numbers = #tpu.dot_dimension_numbers<[1], [0], [0], [1], [0, 0, 1, 1], [], []>} : vector<24x16xf32>, vector<16x128xf32>, vector<24x128xf32> -> vector<24x128xf32>
    %44 = arith.addf %7, %43 : vector<24x128xf32>
    %c2_30 = arith.constant 2 : index
    %c0_31 = arith.constant 0 : index
    %c0_32 = arith.constant 0 : index
    %45 = vector.load %arg3[%c2_30, %c0_31, %c0_32] : memref<4x24x1xf32, #tpu.memory_space<vmem>>, vector<1x24x1xf32>
    %46 = vector.shape_cast %45 : vector<1x24x1xf32> to vector<24x1xf32>
    %47 = vector.broadcast %46 : vector<24x1xf32> to vector<24x128xf32>
    %48 = vector.broadcast %2 : vector<1x128xf32> to vector<24x128xf32>
    %49 = arith.mulf %47, %48 : vector<24x128xf32>
    %50 = arith.addf %44, %49 : vector<24x128xf32>
    %cst_33 = arith.constant 0.000000e+00 : f32
    %51 = vector.broadcast %cst_33 : f32 to vector<24x128xf32>
    %52 = arith.cmpf oge, %50, %51 : vector<24x128xf32>
    %cst_34 = arith.constant 2.000000e-01 : f32
    %53 = vector.broadcast %cst_34 : f32 to vector<24x128xf32>
    %54 = arith.mulf %53, %50 : vector<24x128xf32>
    %55 = arith.select %52, %50, %54 : vector<24x128xi1>, vector<24x128xf32>
    %56 = arith.addf %40, %55 : vector<24x128xf32>
    %c3 = arith.constant 3 : index
    %c0_35 = arith.constant 0 : index
    %c0_36 = arith.constant 0 : index
    %57 = vector.load %arg2[%c3, %c0_35, %c0_36] : memref<4x24x16xf32, #tpu.memory_space<vmem>>, vector<1x24x16xf32>
    %58 = vector.shape_cast %57 : vector<1x24x16xf32> to vector<24x16xf32>
    %cst_37 = arith.constant dense<0.000000e+00> : vector<24x128xf32>
    %59 = tpu.matmul %58, %1, %cst_37 {dimension_numbers = #tpu.dot_dimension_numbers<[1], [0], [0], [1], [0, 0, 1, 1], [], []>} : vector<24x16xf32>, vector<16x128xf32>, vector<24x128xf32> -> vector<24x128xf32>
    %60 = arith.addf %7, %59 : vector<24x128xf32>
    %c3_38 = arith.constant 3 : index
    %c0_39 = arith.constant 0 : index
    %c0_40 = arith.constant 0 : index
    %61 = vector.load %arg3[%c3_38, %c0_39, %c0_40] : memref<4x24x1xf32, #tpu.memory_space<vmem>>, vector<1x24x1xf32>
    %62 = vector.shape_cast %61 : vector<1x24x1xf32> to vector<24x1xf32>
    %63 = vector.broadcast %62 : vector<24x1xf32> to vector<24x128xf32>
    %64 = vector.broadcast %2 : vector<1x128xf32> to vector<24x128xf32>
    %65 = arith.mulf %63, %64 : vector<24x128xf32>
    %66 = arith.addf %60, %65 : vector<24x128xf32>
    %cst_41 = arith.constant 0.000000e+00 : f32
    %67 = vector.broadcast %cst_41 : f32 to vector<24x128xf32>
    %68 = arith.cmpf oge, %66, %67 : vector<24x128xf32>
    %cst_42 = arith.constant 2.000000e-01 : f32
    %69 = vector.broadcast %cst_42 : f32 to vector<24x128xf32>
    %70 = arith.mulf %69, %66 : vector<24x128xf32>
    %71 = arith.select %68, %66, %70 : vector<24x128xi1>, vector<24x128xf32>
    %72 = arith.addf %56, %71 : vector<24x128xf32>
    %c0_43 = arith.constant 0 : index
    %c0_44 = arith.constant 0 : index
    %73 = vector.load %arg8[%c0_43, %c0_44] : memref<128x16xf32, #tpu.memory_space<vmem>>, vector<128x16xf32>
    %cst_45 = arith.constant dense<0.000000e+00> : vector<24x16xf32>
    %74 = tpu.matmul %72, %73, %cst_45 {dimension_numbers = #tpu.dot_dimension_numbers<[1], [0], [0], [1], [0, 0, 1, 1], [], []>} : vector<24x128xf32>, vector<128x16xf32>, vector<24x16xf32> -> vector<24x16xf32>
    %c0_46 = arith.constant 0 : index
    %c0_47 = arith.constant 0 : index
    %75 = vector.load %arg9[%c0_46, %c0_47] : memref<1x16xf32, #tpu.memory_space<vmem>>, vector<1x16xf32>
    %cst_48 = arith.constant 4.000000e+00 : f32
    %76 = vector.broadcast %cst_48 : f32 to vector<1x16xf32>
    %77 = arith.mulf %76, %75 : vector<1x16xf32>
    %78 = vector.broadcast %77 : vector<1x16xf32> to vector<24x16xf32>
    %79 = arith.addf %74, %78 : vector<24x16xf32>
    %c0_49 = arith.constant 0 : index
    %c0_50 = arith.constant 0 : index
    %80 = vector.load %arg12[%c0_49, %c0_50] : memref<16x16xf32, #tpu.memory_space<vmem>>, vector<16x16xf32>
    %cst_51 = arith.constant dense<0.000000e+00> : vector<24x16xf32>
    %81 = tpu.matmul %79, %80, %cst_51 {dimension_numbers = #tpu.dot_dimension_numbers<[1], [0], [0], [1], [0, 0, 1, 1], [], []>} : vector<24x16xf32>, vector<16x16xf32>, vector<24x16xf32> -> vector<24x16xf32>
    %82 = arith.subf %79, %81 : vector<24x16xf32>
    %83 = arith.mulf %82, %82 : vector<24x16xf32>
    %cst_52 = arith.constant dense<0.000000e+00> : vector<24x16xf32>
    %84 = tpu.matmul %83, %80, %cst_52 {dimension_numbers = #tpu.dot_dimension_numbers<[1], [0], [0], [1], [0, 0, 1, 1], [], []>} : vector<24x16xf32>, vector<16x16xf32>, vector<24x16xf32> -> vector<24x16xf32>
    %cst_53 = arith.constant 9.99999974E-6 : f32
    %85 = vector.broadcast %cst_53 : f32 to vector<24x16xf32>
    %86 = arith.addf %84, %85 : vector<24x16xf32>
    %87 = math.rsqrt %86 : vector<24x16xf32>
    %88 = arith.mulf %82, %87 : vector<24x16xf32>
    %c0_54 = arith.constant 0 : index
    %c0_55 = arith.constant 0 : index
    %89 = vector.load %arg10[%c0_54, %c0_55] : memref<1x16xf32, #tpu.memory_space<vmem>>, vector<1x16xf32>
    %90 = vector.broadcast %89 : vector<1x16xf32> to vector<24x16xf32>
    %91 = arith.mulf %88, %90 : vector<24x16xf32>
    %c0_56 = arith.constant 0 : index
    %c0_57 = arith.constant 0 : index
    %92 = vector.load %arg11[%c0_56, %c0_57] : memref<1x16xf32, #tpu.memory_space<vmem>>, vector<1x16xf32>
    %93 = vector.broadcast %92 : vector<1x16xf32> to vector<24x16xf32>
    %94 = arith.addf %91, %93 : vector<24x16xf32>
    %cst_58 = arith.constant 0.000000e+00 : f32
    %95 = vector.broadcast %cst_58 : f32 to vector<24x16xf32>
    %96 = arith.cmpf oge, %94, %95 : vector<24x16xf32>
    %cst_59 = arith.constant 2.000000e-01 : f32
    %97 = vector.broadcast %cst_59 : f32 to vector<24x16xf32>
    %98 = arith.mulf %97, %94 : vector<24x16xf32>
    %99 = arith.select %96, %94, %98 : vector<24x16xi1>, vector<24x16xf32>
    %100 = arith.addf %0, %99 : vector<24x16xf32>
    %c0_60 = arith.constant 0 : index
    %c0_61 = arith.constant 0 : index
    %101 = vector.load %arg13[%c0_60, %c0_61] : memref<24x16xf32, #tpu.memory_space<vmem>>, vector<24x16xf32>
    tpu.vector_store %arg13[%c0_60, %c0_61], %100 {strides = array<i32>} : memref<24x16xf32, #tpu.memory_space<vmem>>, vector<24x16xf32>,
    return
  }
  func.func @transform_0(%arg0: i32) -> (i32, i32) {
    %c0_i32 = arith.constant 0 : i32
    %c0_i32_0 = arith.constant 0 : i32
    return %arg0, %c0_i32 : i32, i32
  }
  func.func @transform_1(%arg0: i32) -> (i32, i32, i32) {
    %c0_i32 = arith.constant 0 : i32
    %c0_i32_0 = arith.constant 0 : i32
    %c0_i32_1 = arith.constant 0 : i32
    return %c0_i32, %arg0, %c0_i32_0 : i32, i32, i32
  }
  func.func @transform_2(%arg0: i32) -> (i32, i32, i32) {
    %c0_i32 = arith.constant 0 : i32
    %c0_i32_0 = arith.constant 0 : i32
    %c0_i32_1 = arith.constant 0 : i32
    return %c0_i32, %arg0, %c0_i32_0 : i32, i32, i32
  }
  func.func @transform_3(%arg0: i32) -> (i32, i32) {
    %c0_i32 = arith.constant 0 : i32
    %c0_i32_0 = arith.constant 0 : i32
    %c0_i32_1 = arith.constant 0 : i32
    return %c0_i32, %c0_i32_0 : i32, i32
  }
  func.func @transform_4(%arg0: i32) -> (i32, i32) {
    %c0_i32 = arith.constant 0 : i32
    %c0_i32_0 = arith.constant 0 : i32
    %c0_i32_1 = arith.constant 0 : i32
    return %c0_i32, %c0_i32_0 : i32, i32
  }
  func.func @transform_5(%arg0: i32) -> (i32, i32) {
    %c0_i32 = arith.constant 0 : i32
    %c0_i32_0 = arith.constant 0 : i32
    %c0_i32_1 = arith.constant 0 : i32
    return %c0_i32, %c0_i32_0 : i32, i32
  }
  func.func @transform_6(%arg0: i32) -> (i32, i32) {
    %c0_i32 = arith.constant 0 : i32
    %c0_i32_0 = arith.constant 0 : i32
    %c0_i32_1 = arith.constant 0 : i32
    return %c0_i32, %c0_i32_0 : i32, i32
  }
  func.func @transform_7(%arg0: i32) -> (i32, i32) {
    %c0_i32 = arith.constant 0 : i32
    %c0_i32_0 = arith.constant 0 : i32
    %c0_i32_1 = arith.constant 0 : i32
    return %c0_i32, %c0_i32_0 : i32, i32
  }
  func.func @transform_8(%arg0: i32) -> (i32, i32) {
    %c0_i32 = arith.constant 0 : i32
    %c0_i32_0 = arith.constant 0 : i32
    %c0_i32_1 = arith.constant 0 : i32
    return %c0_i32, %c0_i32_0 : i32, i32
  }
  func.func @transform_9(%arg0: i32) -> (i32, i32) {
    %c0_i32 = arith.constant 0 : i32
    %c0_i32_0 = arith.constant 0 : i32
    %c0_i32_1 = arith.constant 0 : i32
    return %c0_i32, %c0_i32_0 : i32, i32
  }
  func.func @transform_10(%arg0: i32) -> (i32, i32) {
    %c0_i32 = arith.constant 0 : i32
    %c0_i32_0 = arith.constant 0 : i32
    %c0_i32_1 = arith.constant 0 : i32
    return %c0_i32, %c0_i32_0 : i32, i32
  }
  func.func @transform_11(%arg0: i32) -> (i32, i32) {
    %c0_i32 = arith.constant 0 : i32
    %c0_i32_0 = arith.constant 0 : i32
    %c0_i32_1 = arith.constant 0 : i32
    return %c0_i32, %c0_i32_0 : i32, i32
  }
  func.func @transform_12(%arg0: i32) -> (i32, i32) {
    %c0_i32 = arith.constant 0 : i32
    %c0_i32_0 = arith.constant 0 : i32
    return %arg0, %c0_i32 : i32, i32
  }
}

</mosaic_0001>

<llo_original>
// kernel: res_res_embedding_mp_forward.4
$region0: #{res_res_embedding_mp_forward.4}
  #allocation0 [shape = 'u32[]', space=smem, size = 0x4, offset = 0x4, fixed_abs, tag = 'smem constant byte address 0x4 - core index']
  #allocation1 [shape = 'u32[72,128]{1,0:T(1,128)}', space=vmem, size = 0x9000, scoped, tag = 'internal scratch']
  %s0 = inlined_call_operand.vmem [shape: f32[24,3], index: 0, kind: input, shape index: {}]
  %s1 = inlined_call_operand.vmem [shape: f32[3,128], index: 1, kind: input, shape index: {}]
  %s2 = inlined_call_operand.vmem [shape: s32[24,1], index: 2, kind: input, shape index: {}]
  %s3 = inlined_call_operand.vmem [shape: s32[1,128], index: 3, kind: input, shape index: {}]
  %s4 = inlined_call_operand.vmem [shape: f32[24,128], index: 4, kind: output, shape index: {}]
  %s5 = sld [smem:[#allocation0]]
  $region26: #{res_res_embedding_mp_forward.4} parent=0
    _
  %s7 = ssub.s32 1, %s5
  %s8 = scalar_select 0, %s7, %s5
  // Predicated region
  $region2: #{res_res_embedding_mp_forward.4} parent=0 // pred_check
    _
  $region3: #{res_res_embedding_mp_forward.4} parent=0 // pred_check_branch
    %10 = sbr.rel (0) target = $region5
  $region4: #{res_res_embedding_mp_forward.4} parent=0 // pred_region
    _
  $region5: #{res_res_embedding_mp_forward.4} parent=0 // pred_fallthru
    _
  // Predicated region
  $region6: #{res_res_embedding_mp_forward.4} parent=0 // pred_check
    _
  $region7: #{res_res_embedding_mp_forward.4} parent=0 // pred_check_branch
    %12 = sbr.rel (0) target = $region9
  $region8: #{res_res_embedding_mp_forward.4} parent=0 // pred_region
    _
  $region9: #{res_res_embedding_mp_forward.4} parent=0 // pred_fallthru
    _
  // Predicated region
  $region10: #{res_res_embedding_mp_forward.4} parent=0 // pred_check
    _
  $region11: #{res_res_embedding_mp_forward.4} parent=0 // pred_check_branch
    %14 = sbr.rel (0) target = $region13
  $region12: #{res_res_embedding_mp_forward.4} parent=0 // pred_region
    _
  $region13: #{res_res_embedding_mp_forward.4} parent=0 // pred_fallthru
    _
  // Predicated region
  $region14: #{res_res_embedding_mp_forward.4} parent=0 // pred_check
    _
  $region15: #{res_res_embedding_mp_forward.4} parent=0 // pred_check_branch
    %16 = sbr.rel (0) target = $region17
  $region16: #{res_res_embedding_mp_forward.4} parent=0 // pred_region
    _
  $region17: #{res_res_embedding_mp_forward.4} parent=0 // pred_fallthru
    _
  %v17 = vld [vmem:[%s0] sm:$0xff]
  %v18 = vld [vmem:[%s0 + $0x8] sm:$0xff]
  %v19 = vld [vmem:[%s0 + $0x10] sm:$0xff]
  %v20 = vld [vmem:[%s1] sm:$0x1]
  %22 = vset.pattern.permute.xlu0 0
  %23 = vperm.xlu0 %22, %v17
  %v24 = vpop.permute.xlu0 %23
  %27 = vset.pattern.permute.xlu0 0
  %28 = vperm.xlu0 %27, %v18
  %v29 = vpop.permute.xlu0 %28
  %32 = vset.pattern.permute.xlu0 0
  %33 = vperm.xlu0 %32, %v19
  %v34 = vpop.permute.xlu0 %33
  %v36 = vperm.slane %v20, 0
  %v37 = vsub.f32 %v24, %v36
  %v38 = vsub.f32 %v29, %v36
  %v39 = vsub.f32 %v34, %v36
  %v40 = vmul.f32 %v37, %v37
  %v41 = vmul.f32 %v38, %v38
  %v42 = vmul.f32 %v39, %v39
  %v43 = vadd.f32 %v40, 0.0
  %v44 = vadd.f32 %v41, 0.0
  %v45 = vadd.f32 %v42, 0.0
  %v46 = vld [vmem:[%s1 + $0x1] sm:$0x1]
  %47 = vset.pattern.permute.xlu0 1
  %48 = vperm.xlu0 %47, %v17
  %v49 = vpop.permute.xlu0 %48
  %51 = vset.pattern.permute.xlu0 1
  %52 = vperm.xlu0 %51, %v18
  %v53 = vpop.permute.xlu0 %52
  %55 = vset.pattern.permute.xlu0 1
  %56 = vperm.xlu0 %55, %v19
  %v57 = vpop.permute.xlu0 %56
  %v59 = vperm.slane %v46, 0
  %v60 = vsub.f32 %v49, %v59
  %v61 = vsub.f32 %v53, %v59
  %v62 = vsub.f32 %v57, %v59
  %v63 = vmul.f32 %v60, %v60
  %v64 = vmul.f32 %v61, %v61
  %v65 = vmul.f32 %v62, %v62
  %v66 = vadd.f32 %v43, %v63
  %v67 = vadd.f32 %v44, %v64
  %v68 = vadd.f32 %v45, %v65
  %v69 = vld [vmem:[%s1 + $0x2] sm:$0x1]
  %70 = vset.pattern.permute.xlu0 2
  %71 = vperm.xlu0 %70, %v17
  %v72 = vpop.permute.xlu0 %71
  %74 = vset.pattern.permute.xlu0 2
  %75 = vperm.xlu0 %74, %v18
  %v76 = vpop.permute.xlu0 %75
  %78 = vset.pattern.permute.xlu0 2
  %79 = vperm.xlu0 %78, %v19
  %v80 = vpop.permute.xlu0 %79
  %v82 = vperm.slane %v69, 0
  %v83 = vsub.f32 %v72, %v82
  %v84 = vsub.f32 %v76, %v82
  %v85 = vsub.f32 %v80, %v82
  %v86 = vmul.f32 %v83, %v83
  %v87 = vmul.f32 %v84, %v84
  %v88 = vmul.f32 %v85, %v85
  %v89 = vadd.f32 %v66, %v86
  %v90 = vadd.f32 %v67, %v87
  %v91 = vadd.f32 %v68, %v88
  %v92 = vld [vmem:[%s2] sm:$0xff]
  %v93 = vld [vmem:[%s2 + $0x8] sm:$0xff]
  %v94 = vld [vmem:[%s2 + $0x10] sm:$0xff]
  %v95 = vld [vmem:[%s3] sm:$0x1]
  %96 = vset.pattern.permute.xlu0 0
  %97 = vperm.xlu0 %96, %v92
  %v98 = vpop.permute.xlu0 %97
  %99 = vset.pattern.permute.xlu0 0
  %100 = vperm.xlu0 %99, %v93
  %v101 = vpop.permute.xlu0 %100
  %102 = vset.pattern.permute.xlu0 0
  %103 = vperm.xlu0 %102, %v94
  %v104 = vpop.permute.xlu0 %103
  %v105 = vperm.slane %v95, 0
  %vm106 = vcmp.eq.s32.totalorder %v98, %v105
  %vm107 = vcmp.eq.s32.totalorder %v101, %v105
  %vm108 = vcmp.eq.s32.totalorder %v104, %v105
  %v109 = vsel %vm106, %v89, 1e+30
  %v110 = vsel %vm107, %v90, 1e+30
  %v111 = vsel %vm108, %v91, 1e+30
  %112 = vst [vmem:[%s4] sm:$0xff] %v109
  %113 = vst [vmem:[%s4 + $0x8] sm:$0xff] %v110
  %114 = vst [vmem:[%s4 + $0x10] sm:$0xff] %v111
  // Predicated region
  $region18: #{res_res_embedding_mp_forward.4} parent=0 // pred_check
    _
  $region19: #{res_res_embedding_mp_forward.4} parent=0 // pred_check_branch
    %116 = sbr.rel (0) target = $region21
  $region20: #{res_res_embedding_mp_forward.4} parent=0 // pred_region
    _
  $region21: #{res_res_embedding_mp_forward.4} parent=0 // pred_fallthru
    _
  // Predicated region
  $region22: #{res_res_embedding_mp_forward.4} parent=0 // pred_check
    _
  $region23: #{res_res_embedding_mp_forward.4} parent=0 // pred_check_branch
    %118 = sbr.rel (0) target = $region25
  $region24: #{res_res_embedding_mp_forward.4} parent=0 // pred_region
    _
  $region25: #{res_res_embedding_mp_forward.4} parent=0 // pred_fallthru
    _

// kernel: res_res_embedding_mp_forward.5
$region0: #{res_res_embedding_mp_forward.5}
  #allocation0 [shape = 'u32[]', space=smem, size = 0x4, offset = 0x4, fixed_abs, tag = 'smem constant byte address 0x4 - core index']
  #allocation1 [shape = 'u32[72,128]{1,0:T(1,128)}', space=vmem, size = 0x9000, scoped, tag = 'internal scratch']
  %s0 = inlined_call_operand.vmem [shape: f32[24,16], index: 0, kind: input, shape index: {}]
  %s1 = inlined_call_operand.vmem [shape: f32[4,24,16], index: 1, kind: input, shape index: {}]
  %s2 = inlined_call_operand.vmem [shape: f32[4,24,1], index: 2, kind: input, shape index: {}]
  %s3 = inlined_call_operand.vmem [shape: f32[16,128], index: 3, kind: input, shape index: {}]
  %s4 = inlined_call_operand.vmem [shape: f32[16,128], index: 4, kind: input, shape index: {}]
  %s5 = inlined_call_operand.vmem [shape: f32[1,128], index: 5, kind: input, shape index: {}]
  %s6 = inlined_call_operand.vmem [shape: f32[1,128], index: 6, kind: input, shape index: {}]
  %s7 = inlined_call_operand.vmem [shape: f32[128,16], index: 7, kind: input, shape index: {}]
  %s8 = inlined_call_operand.vmem [shape: f32[1,16], index: 8, kind: input, shape index: {}]
  %s9 = inlined_call_operand.vmem [shape: f32[1,16], index: 9, kind: input, shape index: {}]
  %s10 = inlined_call_operand.vmem [shape: f32[1,16], index: 10, kind: input, shape index: {}]
  %s11 = inlined_call_operand.vmem [shape: f32[16,16], index: 11, kind: input, shape index: {}]
  %s12 = inlined_call_operand.vmem [shape: f32[24,16], index: 12, kind: output, shape index: {}]
  %s13 = sld [smem:[#allocation0]]
  $region58: #{res_res_embedding_mp_forward.5} parent=0
    _
  %s15 = ssub.s32 1, %s13
  %s16 = scalar_select 0, %s15, %s13
  // Predicated region
  $region2: #{res_res_embedding_mp_forward.5} parent=0 // pred_check
    _
  $region3: #{res_res_embedding_mp_forward.5} parent=0 // pred_check_branch
    %18 = sbr.rel (0) target = $region5
  $region4: #{res_res_embedding_mp_forward.5} parent=0 // pred_region
    _
  $region5: #{res_res_embedding_mp_forward.5} parent=0 // pred_fallthru
    _
  // Predicated region
  $region6: #{res_res_embedding_mp_forward.5} parent=0 // pred_check
    _
  $region7: #{res_res_embedding_mp_forward.5} parent=0 // pred_check_branch
    %20 = sbr.rel (0) target = $region9
  $region8: #{res_res_embedding_mp_forward.5} parent=0 // pred_region
    _
  $region9: #{res_res_embedding_mp_forward.5} parent=0 // pred_fallthru
    _
  // Predicated region
  $region10: #{res_res_embedding_mp_forward.5} parent=0 // pred_check
    _
  $region11: #{res_res_embedding_mp_forward.5} parent=0 // pred_check_branch
    %22 = sbr.rel (0) target = $region13
  $region12: #{res_res_embedding_mp_forward.5} parent=0 // pred_region
    _
  $region13: #{res_res_embedding_mp_forward.5} parent=0 // pred_fallthru
    _
  // Predicated region
  $region14: #{res_res_embedding_mp_forward.5} parent=0 // pred_check
    _
  $region15: #{res_res_embedding_mp_forward.5} parent=0 // pred_check_branch
    %24 = sbr.rel (0) target = $region17
  $region16: #{res_res_embedding_mp_forward.5} parent=0 // pred_region
    _
  $region17: #{res_res_embedding_mp_forward.5} parent=0 // pred_fallthru
    _
  // Predicated region
  $region18: #{res_res_embedding_mp_forward.5} parent=0 // pred_check
    _
  $region19: #{res_res_embedding_mp_forward.5} parent=0 // pred_check_branch
    %26 = sbr.rel (0) target = $region21
  $region20: #{res_res_embedding_mp_forward.5} parent=0 // pred_region
    _
  $region21: #{res_res_embedding_mp_forward.5} parent=0 // pred_fallthru
    _
  // Predicated region
  $region22: #{res_res_embedding_mp_forward.5} parent=0 // pred_check
    _
  $region23: #{res_res_embedding_mp_forward.5} parent=0 // pred_check_branch
    %28 = sbr.rel (0) target = $region25
  $region24: #{res_res_embedding_mp_forward.5} parent=0 // pred_region
    _
  $region25: #{res_res_embedding_mp_forward.5} parent=0 // pred_fallthru
    _
  // Predicated region
  $region26: #{res_res_embedding_mp_forward.5} parent=0 // pred_check
    _
  $region27: #{res_res_embedding_mp_forward.5} parent=0 // pred_check_branch
    %30 = sbr.rel (0) target = $region29
  $region28: #{res_res_embedding_mp_forward.5} parent=0 // pred_region
    _
  $region29: #{res_res_embedding_mp_forward.5} parent=0 // pred_fallthru
    _
  // Predicated region
  $region30: #{res_res_embedding_mp_forward.5} parent=0 // pred_check
    _
  $region31: #{res_res_embedding_mp_forward.5} parent=0 // pred_check_branch
    %32 = sbr.rel (0) target = $region33
  $region32: #{res_res_embedding_mp_forward.5} parent=0 // pred_region
    _
  $region33: #{res_res_embedding_mp_forward.5} parent=0 // pred_fallthru
    _
  // Predicated region
  $region34: #{res_res_embedding_mp_forward.5} parent=0 // pred_check
    _
  $region35: #{res_res_embedding_mp_forward.5} parent=0 // pred_check_branch
    %34 = sbr.rel (0) target = $region37
  $region36: #{res_res_embedding_mp_forward.5} parent=0 // pred_region
    _
  $region37: #{res_res_embedding_mp_forward.5} parent=0 // pred_fallthru
    _
  // Predicated region
  $region38: #{res_res_embedding_mp_forward.5} parent=0 // pred_check
    _
  $region39: #{res_res_embedding_mp_forward.5} parent=0 // pred_check_branch
    %36 = sbr.rel (0) target = $region41
  $region40: #{res_res_embedding_mp_forward.5} parent=0 // pred_region
    _
  $region41: #{res_res_embedding_mp_forward.5} parent=0 // pred_fallthru
    _
  // Predicated region
  $region42: #{res_res_embedding_mp_forward.5} parent=0 // pred_check
    _
  $region43: #{res_res_embedding_mp_forward.5} parent=0 // pred_check_branch
    %38 = sbr.rel (0) target = $region45
  $region44: #{res_res_embedding_mp_forward.5} parent=0 // pred_region
    _
  $region45: #{res_res_embedding_mp_forward.5} parent=0 // pred_fallthru
    _
  // Predicated region
  $region46: #{res_res_embedding_mp_forward.5} parent=0 // pred_check
    _
  $region47: #{res_res_embedding_mp_forward.5} parent=0 // pred_check_branch
    %40 = sbr.rel (0) target = $region49
  $region48: #{res_res_embedding_mp_forward.5} parent=0 // pred_region
    _
  $region49: #{res_res_embedding_mp_forward.5} parent=0 // pred_fallthru
    _
  %v41 = vld [vmem:[%s0] sm:$0xff]
  %v42 = vld [vmem:[%s0 + $0x8] sm:$0xff]
  %v43 = vld [vmem:[%s0 + $0x10] sm:$0xff]
  %v44 = vld [vmem:[%s4] sm:$0xff]
  %v45 = vld [vmem:[%s4 + $0x8] sm:$0xff]
  %v46 = vld [vmem:[%s5] sm:$0x1]
  %v47 = vld [vmem:[%s3] sm:$0xff]
  %v48 = vld [vmem:[%s3 + $0x8] sm:$0xff]
  %v49 = vld [vmem:[%s6] sm:$0x1]
  %v51 = vperm.slane %v49, 0
  %vm53 = vcmask 130048
  %v55 = vsel %vm53, %v41, 0
  %v58 = vsel %vm53, %v42, 0
  %v61 = vsel %vm53, %v43, 0
  %63 = vmatpush.msra.mxu0 0.0
  %64 = vmatpush.msra.mxu0 0.0
  %65 = vmatpush.msra.mxu0 0.0
  %66 = vmatpush.msra.mxu0 0.0
  %67 = vmatpush.msra.mxu0 0.0
  %68 = vmatpush.msra.mxu0 0.0
  %69 = vmatpush.msra.mxu0 0.0
  %70 = vmatpush.msra.mxu0 0.0
  %71 = vmatpush.msra.mxu0 0.0
  %72 = vmatpush.msra.mxu0 0.0
  %73 = vmatpush.msra.mxu0 0.0
  %74 = vmatpush.msra.mxu0 0.0
  %75 = vmatpush.msra.mxu0 0.0
  %76 = vmatpush.msra.mxu0 0.0
  %77 = vmatpush.msra.mxu0 %v48
  %78 = vmatpush.msra.mxu0 %v47
  %79 = vmatmul.f32.gmra.mxu0 %v55
  %v80 = vpop.f32.mrf.mxu0
  %v81 = vadd.f32 %v51, %v80
  %82 = vmatmul.f32.gmra.mxu0 %v58
  %v83 = vpop.f32.mrf.mxu0
  %v84 = vadd.f32 %v51, %v83
  %85 = vmatmul.f32.gmra.mxu0 %v61
  %v86 = vpop.f32.mrf.mxu0
  %v87 = vadd.f32 %v51, %v86
  %88 = vdwg.mxu0
  %v89 = vld [vmem:[%s1] sm:$0xff]
  %v90 = vld [vmem:[%s1 + $0x8] sm:$0xff]
  %v91 = vld [vmem:[%s1 + $0x10] sm:$0xff]
  %v93 = vsel %vm53, %v89, 0
  %v96 = vsel %vm53, %v90, 0
  %v99 = vsel %vm53, %v91, 0
  %101 = vmatpush.msra.mxu0 0.0
  %102 = vmatpush.msra.mxu0 0.0
  %103 = vmatpush.msra.mxu0 0.0
  %104 = vmatpush.msra.mxu0 0.0
  %105 = vmatpush.msra.mxu0 0.0
  %106 = vmatpush.msra.mxu0 0.0
  %107 = vmatpush.msra.mxu0 0.0
  %108 = vmatpush.msra.mxu0 0.0
  %109 = vmatpush.msra.mxu0 0.0
  %110 = vmatpush.msra.mxu0 0.0
  %111 = vmatpush.msra.mxu0 0.0
  %112 = vmatpush.msra.mxu0 0.0
  %113 = vmatpush.msra.mxu0 0.0
  %114 = vmatpush.msra.mxu0 0.0
  %115 = vmatpush.msra.mxu0 %v45
  %116 = vmatpush.msra.mxu0 %v44
  %117 = vmatmul.f32.gmra.mxu0 %v93
  %v118 = vpop.f32.mrf.mxu0
  %v119 = vadd.f32 0.0, %v118
  %120 = vmatmul.f32.gmra.mxu0 %v96
  %v121 = vpop.f32.mrf.mxu0
  %v122 = vadd.f32 0.0, %v121
  %123 = vmatmul.f32.gmra.mxu0 %v99
  %v124 = vpop.f32.mrf.mxu0
  %v125 = vadd.f32 0.0, %v124
  %126 = vdwg.mxu0
  %v127 = vadd.f32 %v81, %v119
  %v128 = vadd.f32 %v84, %v122
  %v129 = vadd.f32 %v87, %v125
  %v130 = vld [vmem:[%s2] sm:$0xff]
  %v131 = vld [vmem:[%s2 + $0x8] sm:$0xff]
  %v132 = vld [vmem:[%s2 + $0x10] sm:$0xff]
  %134 = vset.pattern.permute.xlu0 0
  %135 = vperm.xlu0 %134, %v130
  %v136 = vpop.permute.xlu0 %135
  %139 = vset.pattern.permute.xlu0 0
  %140 = vperm.xlu0 %139, %v131
  %v141 = vpop.permute.xlu0 %140
  %144 = vset.pattern.permute.xlu0 0
  %145 = vperm.xlu0 %144, %v132
  %v146 = vpop.permute.xlu0 %145
  %v149 = vperm.slane %v46, 0
  %v151 = vmul.f32 %v136, %v149
  %v152 = vmul.f32 %v141, %v149
  %v153 = vmul.f32 %v146, %v149
  %v154 = vadd.f32 %v127, %v151
  %v155 = vadd.f32 %v128, %v152
  %v156 = vadd.f32 %v129, %v153
  %vm157 = vcmp.ge.f32.partialorder %v154, 0.0
  %vm158 = vcmp.ge.f32.partialorder %v155, 0.0
  %vm159 = vcmp.ge.f32.partialorder %v156, 0.0
  %v160 = vmul.f32 %v154, 0.2
  %v161 = vmul.f32 %v155, 0.2
  %v162 = vmul.f32 %v156, 0.2
  %v163 = vsel %vm157, %v154, %v160
  %v164 = vsel %vm158, %v155, %v161
  %v165 = vsel %vm159, %v156, %v162
  %v166 = vadd.f32 %v163, 0.0
  %v167 = vadd.f32 %v164, 0.0
  %v168 = vadd.f32 %v165, 0.0
  %s169 = scalar_lea.vmem %s1, 24
  %v170 = vld [vmem:[%s169] sm:$0xff]
  %v171 = vld [vmem:[%s169 + $0x8] sm:$0xff]
  %v172 = vld [vmem:[%s169 + $0x10] sm:$0xff]
  %v174 = vsel %vm53, %v170, 0
  %v177 = vsel %vm53, %v171, 0
  %v180 = vsel %vm53, %v172, 0
  %182 = vmatpush.msra.mxu0 0.0
  %183 = vmatpush.msra.mxu0 0.0
  %184 = vmatpush.msra.mxu0 0.0
  %185 = vmatpush.msra.mxu0 0.0
  %186 = vmatpush.msra.mxu0 0.0
  %187 = vmatpush.msra.mxu0 0.0
  %188 = vmatpush.msra.mxu0 0.0
  %189 = vmatpush.msra.mxu0 0.0
  %190 = vmatpush.msra.mxu0 0.0
  %191 = vmatpush.msra.mxu0 0.0
  %192 = vmatpush.msra.mxu0 0.0
  %193 = vmatpush.msra.mxu0 0.0
  %194 = vmatpush.msra.mxu0 0.0
  %195 = vmatpush.msra.mxu0 0.0
  %196 = vmatpush.msra.mxu0 %v45
  %197 = vmatpush.msra.mxu0 %v44
  %198 = vmatmul.f32.gmra.mxu0 %v174
  %v199 = vpop.f32.mrf.mxu0
  %v200 = vadd.f32 0.0, %v199
  %201 = vmatmul.f32.gmra.mxu0 %v177
  %v202 = vpop.f32.mrf.mxu0
  %v203 = vadd.f32 0.0, %v202
  %204 = vmatmul.f32.gmra.mxu0 %v180
  %v205 = vpop.f32.mrf.mxu0
  %v206 = vadd.f32 0.0, %v205
  %207 = vdwg.mxu0
  %v208 = vadd.f32 %v81, %v200
  %v209 = vadd.f32 %v84, %v203
  %v210 = vadd.f32 %v87, %v206
  %s211 = scalar_lea.vmem %s2, 24
  %v212 = vld [vmem:[%s211] sm:$0xff]
  %v213 = vld [vmem:[%s211 + $0x8] sm:$0xff]
  %v214 = vld [vmem:[%s211 + $0x10] sm:$0xff]
  %216 = vset.pattern.permute.xlu0 0
  %217 = vperm.xlu0 %216, %v212
  %v218 = vpop.permute.xlu0 %217
  %221 = vset.pattern.permute.xlu0 0
  %222 = vperm.xlu0 %221, %v213
  %v223 = vpop.permute.xlu0 %222
  %226 = vset.pattern.permute.xlu0 0
  %227 = vperm.xlu0 %226, %v214
  %v228 = vpop.permute.xlu0 %227
  %v230 = vmul.f32 %v218, %v149
  %v231 = vmul.f32 %v223, %v149
  %v232 = vmul.f32 %v228, %v149
  %v233 = vadd.f32 %v208, %v230
  %v234 = vadd.f32 %v209, %v231
  %v235 = vadd.f32 %v210, %v232
  %vm236 = vcmp.ge.f32.partialorder %v233, 0.0
  %vm237 = vcmp.ge.f32.partialorder %v234, 0.0
  %vm238 = vcmp.ge.f32.partialorder %v235, 0.0
  %v239 = vmul.f32 %v233, 0.2
  %v240 = vmul.f32 %v234, 0.2
  %v241 = vmul.f32 %v235, 0.2
  %v242 = vsel %vm236, %v233, %v239
  %v243 = vsel %vm237, %v234, %v240
  %v244 = vsel %vm238, %v235, %v241
  %v245 = vadd.f32 %v166, %v242
  %v246 = vadd.f32 %v167, %v243
  %v247 = vadd.f32 %v168, %v244
  %s248 = scalar_lea.vmem %s1, 48
  %v249 = vld [vmem:[%s248] sm:$0xff]
  %v250 = vld [vmem:[%s248 + $0x8] sm:$0xff]
  %v251 = vld [vmem:[%s248 + $0x10] sm:$0xff]
  %v253 = vsel %vm53, %v249, 0
  %v256 = vsel %vm53, %v250, 0
  %v259 = vsel %vm53, %v251, 0
  %261 = vmatpush.msra.mxu0 0.0
  %262 = vmatpush.msra.mxu0 0.0
  %263 = vmatpush.msra.mxu0 0.0
  %264 = vmatpush.msra.mxu0 0.0
  %265 = vmatpush.msra.mxu0 0.0
  %266 = vmatpush.msra.mxu0 0.0
  %267 = vmatpush.msra.mxu0 0.0
  %268 = vmatpush.msra.mxu0 0.0
  %269 = vmatpush.msra.mxu0 0.0
  %270 = vmatpush.msra.mxu0 0.0
  %271 = vmatpush.msra.mxu0 0.0
  %272 = vmatpush.msra.mxu0 0.0
  %273 = vmatpush.msra.mxu0 0.0
  %274 = vmatpush.msra.mxu0 0.0
  %275 = vmatpush.msra.mxu0 %v45
  %276 = vmatpush.msra.mxu0 %v44
  %277 = vmatmul.f32.gmra.mxu0 %v253
  %v278 = vpop.f32.mrf.mxu0
  %v279 = vadd.f32 0.0, %v278
  %280 = vmatmul.f32.gmra.mxu0 %v256
  %v281 = vpop.f32.mrf.mxu0
  %v282 = vadd.f32 0.0, %v281
  %283 = vmatmul.f32.gmra.mxu0 %v259
  %v284 = vpop.f32.mrf.mxu0
  %v285 = vadd.f32 0.0, %v284
  %286 = vdwg.mxu0
  %v287 = vadd.f32 %v81, %v279
  %v288 = vadd.f32 %v84, %v282
  %v289 = vadd.f32 %v87, %v285
  %s290 = scalar_lea.vmem %s2, 48
  %v291 = vld [vmem:[%s290] sm:$0xff]
  %v292 = vld [vmem:[%s290 + $0x8] sm:$0xff]
  %v293 = vld [vmem:[%s290 + $0x10] sm:$0xff]
  %295 = vset.pattern.permute.xlu0 0
  %296 = vperm.xlu0 %295, %v291
  %v297 = vpop.permute.xlu0 %296
  %300 = vset.pattern.permute.xlu0 0
  %301 = vperm.xlu0 %300, %v292
  %v302 = vpop.permute.xlu0 %301
  %305 = vset.pattern.permute.xlu0 0
  %306 = vperm.xlu0 %305, %v293
  %v307 = vpop.permute.xlu0 %306
  %v309 = vmul.f32 %v297, %v149
  %v310 = vmul.f32 %v302, %v149
  %v311 = vmul.f32 %v307, %v149
  %v312 = vadd.f32 %v287, %v309
  %v313 = vadd.f32 %v288, %v310
  %v314 = vadd.f32 %v289, %v311
  %vm315 = vcmp.ge.f32.partialorder %v312, 0.0
  %vm316 = vcmp.ge.f32.partialorder %v313, 0.0
  %vm317 = vcmp.ge.f32.partialorder %v314, 0.0
  %v318 = vmul.f32 %v312, 0.2
  %v319 = vmul.f32 %v313, 0.2
  %v320 = vmul.f32 %v314, 0.2
  %v321 = vsel %vm315, %v312, %v318
  %v322 = vsel %vm316, %v313, %v319
  %v323 = vsel %vm317, %v314, %v320
  %v324 = vadd.f32 %v245, %v321
  %v325 = vadd.f32 %v246, %v322
  %v326 = vadd.f32 %v247, %v323
  %s327 = scalar_lea.vmem %s1, 72
  %v328 = vld [vmem:[%s327] sm:$0xff]
  %v329 = vld [vmem:[%s327 + $0x8] sm:$0xff]
  %v330 = vld [vmem:[%s327 + $0x10] sm:$0xff]
  %v332 = vsel %vm53, %v328, 0
  %v335 = vsel %vm53, %v329, 0
  %v338 = vsel %vm53, %v330, 0
  %340 = vmatpush.msra.mxu0 0.0
  %341 = vmatpush.msra.mxu0 0.0
  %342 = vmatpush.msra.mxu0 0.0
  %343 = vmatpush.msra.mxu0 0.0
  %344 = vmatpush.msra.mxu0 0.0
  %345 = vmatpush.msra.mxu0 0.0
  %346 = vmatpush.msra.mxu0 0.0
  %347 = vmatpush.msra.mxu0 0.0
  %348 = vmatpush.msra.mxu0 0.0
  %349 = vmatpush.msra.mxu0 0.0
  %350 = vmatpush.msra.mxu0 0.0
  %351 = vmatpush.msra.mxu0 0.0
  %352 = vmatpush.msra.mxu0 0.0
  %353 = vmatpush.msra.mxu0 0.0
  %354 = vmatpush.msra.mxu0 %v45
  %355 = vmatpush.msra.mxu0 %v44
  %356 = vmatmul.f32.gmra.mxu0 %v332
  %v357 = vpop.f32.mrf.mxu0
  %v358 = vadd.f32 0.0, %v357
  %359 = vmatmul.f32.gmra.mxu0 %v335
  %v360 = vpop.f32.mrf.mxu0
  %v361 = vadd.f32 0.0, %v360
  %362 = vmatmul.f32.gmra.mxu0 %v338
  %v363 = vpop.f32.mrf.mxu0
  %v364 = vadd.f32 0.0, %v363
  %365 = vdwg.mxu0
  %v366 = vadd.f32 %v81, %v358
  %v367 = vadd.f32 %v84, %v361
  %v368 = vadd.f32 %v87, %v364
  %s369 = scalar_lea.vmem %s2, 72
  %v370 = vld [vmem:[%s369] sm:$0xff]
  %v371 = vld [vmem:[%s369 + $0x8] sm:$0xff]
  %v372 = vld [vmem:[%s369 + $0x10] sm:$0xff]
  %374 = vset.pattern.permute.xlu0 0
  %375 = vperm.xlu0 %374, %v370
  %v376 = vpop.permute.xlu0 %375
  %379 = vset.pattern.permute.xlu0 0
  %380 = vperm.xlu0 %379, %v371
  %v381 = vpop.permute.xlu0 %380
  %384 = vset.pattern.permute.xlu0 0
  %385 = vperm.xlu0 %384, %v372
  %v386 = vpop.permute.xlu0 %385
  %v388 = vmul.f32 %v376, %v149
  %v389 = vmul.f32 %v381, %v149
  %v390 = vmul.f32 %v386, %v149
  %v391 = vadd.f32 %v366, %v388
  %v392 = vadd.f32 %v367, %v389
  %v393 = vadd.f32 %v368, %v390
  %vm394 = vcmp.ge.f32.partialorder %v391, 0.0
  %vm395 = vcmp.ge.f32.partialorder %v392, 0.0
  %vm396 = vcmp.ge.f32.partialorder %v393, 0.0
  %v397 = vmul.f32 %v391, 0.2
  %v398 = vmul.f32 %v392, 0.2
  %v399 = vmul.f32 %v393, 0.2
  %v400 = vsel %vm394, %v391, %v397
  %v401 = vsel %vm395, %v392, %v398
  %v402 = vsel %vm396, %v393, %v399
  %v403 = vadd.f32 %v324, %v400
  %v404 = vadd.f32 %v325, %v401
  %v405 = vadd.f32 %v326, %v402
  %v406 = vld [vmem:[%s7] sm:$0xff]
  %v407 = vld [vmem:[%s7 + $0x8] sm:$0xff]
  %v408 = vld [vmem:[%s7 + $0x10] sm:$0xff]
  %v409 = vld [vmem:[%s7 + $0x18] sm:$0xff]
  %v410 = vld [vmem:[%s7 + $0x20] sm:$0xff]
  %v411 = vld [vmem:[%s7 + $0x28] sm:$0xff]
  %v412 = vld [vmem:[%s7 + $0x30] sm:$0xff]
  %v413 = vld [vmem:[%s7 + $0x38] sm:$0xff]
  %v414 = vld [vmem:[%s7 + $0x40] sm:$0xff]
  %v415 = vld [vmem:[%s7 + $0x48] sm:$0xff]
  %v416 = vld [vmem:[%s7 + $0x50] sm:$0xff]
  %v417 = vld [vmem:[%s7 + $0x58] sm:$0xff]
  %v418 = vld [vmem:[%s7 + $0x60] sm:$0xff]
  %v419 = vld [vmem:[%s7 + $0x68] sm:$0xff]
  %v420 = vld [vmem:[%s7 + $0x70] sm:$0xff]
  %v421 = vld [vmem:[%s7 + $0x78] sm:$0xff]
  %v422 = vld [vmem:[%s8] sm:$0x1]
  %v423 = vmul.f32 %v422, 4.0
  %v425 = vperm.slane %v423, 0
  %427 = vmatpush.msra.mxu0 %v421
  %428 = vmatpush.msra.mxu0 %v420
  %429 = vmatpush.msra.mxu0 %v419
  %430 = vmatpush.msra.mxu0 %v418
  %431 = vmatpush.msra.mxu0 %v417
  %432 = vmatpush.msra.mxu0 %v416
  %433 = vmatpush.msra.mxu0 %v415
  %434 = vmatpush.msra.mxu0 %v414
  %435 = vmatpush.msra.mxu0 %v413
  %436 = vmatpush.msra.mxu0 %v412
  %437 = vmatpush.msra.mxu0 %v411
  %438 = vmatpush.msra.mxu0 %v410
  %439 = vmatpush.msra.mxu0 %v409
  %440 = vmatpush.msra.mxu0 %v408
  %441 = vmatpush.msra.mxu0 %v407
  %442 = vmatpush.msra.mxu0 %v406
  %443 = vmatmul.f32.gmra.mxu0 %v403
  %v444 = vpop.f32.mrf.mxu0
  %v445 = vadd.f32 %v425, %v444
  %446 = vmatmul.f32.gmra.mxu0 %v404
  %v447 = vpop.f32.mrf.mxu0
  %v448 = vadd.f32 %v425, %v447
  %449 = vmatmul.f32.gmra.mxu0 %v405
  %v450 = vpop.f32.mrf.mxu0
  %v451 = vadd.f32 %v425, %v450
  %452 = vdwg.mxu0
  %v453 = vld [vmem:[%s11] sm:$0xff]
  %v454 = vld [vmem:[%s11 + $0x8] sm:$0xff]
  %v456 = vsel %vm53, %v445, 0
  %v459 = vsel %vm53, %v448, 0
  %v462 = vsel %vm53, %v451, 0
  %464 = vmatpush.msra.mxu0 0.0
  %465 = vmatpush.msra.mxu0 0.0
  %466 = vmatpush.msra.mxu0 0.0
  %467 = vmatpush.msra.mxu0 0.0
  %468 = vmatpush.msra.mxu0 0.0
  %469 = vmatpush.msra.mxu0 0.0
  %470 = vmatpush.msra.mxu0 0.0
  %471 = vmatpush.msra.mxu0 0.0
  %472 = vmatpush.msra.mxu0 0.0
  %473 = vmatpush.msra.mxu0 0.0
  %474 = vmatpush.msra.mxu0 0.0
  %475 = vmatpush.msra.mxu0 0.0
  %476 = vmatpush.msra.mxu0 0.0
  %477 = vmatpush.msra.mxu0 0.0
  %478 = vmatpush.msra.mxu0 %v454
  %479 = vmatpush.msra.mxu0 %v453
  %480 = vmatmul.f32.gmra.mxu0 %v456
  %v481 = vpop.f32.mrf.mxu0
  %v482 = vadd.f32 0.0, %v481
  %483 = vmatmul.f32.gmra.mxu0 %v459
  %v484 = vpop.f32.mrf.mxu0
  %v485 = vadd.f32 0.0, %v484
  %486 = vmatmul.f32.gmra.mxu0 %v462
  %v487 = vpop.f32.mrf.mxu0
  %v488 = vadd.f32 0.0, %v487
  %489 = vdwg.mxu0
  %v490 = vsub.f32 %v445, %v482
  %v491 = vsub.f32 %v448, %v485
  %v492 = vsub.f32 %v451, %v488
  %v493 = vmul.f32 %v490, %v490
  %v494 = vmul.f32 %v491, %v491
  %v495 = vmul.f32 %v492, %v492
  %v497 = vsel %vm53, %v493, 0
  %v500 = vsel %vm53, %v494, 0
  %v503 = vsel %vm53, %v495, 0
  %505 = vmatpush.msra.mxu0 0.0
  %506 = vmatpush.msra.mxu0 0.0
  %507 = vmatpush.msra.mxu0 0.0
  %508 = vmatpush.msra.mxu0 0.0
  %509 = vmatpush.msra.mxu0 0.0
  %510 = vmatpush.msra.mxu0 0.0
  %511 = vmatpush.msra.mxu0 0.0
  %512 = vmatpush.msra.mxu0 0.0
  %513 = vmatpush.msra.mxu0 0.0
  %514 = vmatpush.msra.mxu0 0.0
  %515 = vmatpush.msra.mxu0 0.0
  %516 = vmatpush.msra.mxu0 0.0
  %517 = vmatpush.msra.mxu0 0.0
  %518 = vmatpush.msra.mxu0 0.0
  %519 = vmatpush.msra.mxu0 %v454
  %520 = vmatpush.msra.mxu0 %v453
  %521 = vmatmul.f32.gmra.mxu0 %v497
  %v522 = vpop.f32.mrf.mxu0
  %v523 = vadd.f32 1e-05, %v522
  %524 = vmatmul.f32.gmra.mxu0 %v500
  %v525 = vpop.f32.mrf.mxu0
  %v526 = vadd.f32 1e-05, %v525
  %527 = vmatmul.f32.gmra.mxu0 %v503
  %v528 = vpop.f32.mrf.mxu0
  %v529 = vadd.f32 1e-05, %v528
  %530 = vdwg.mxu0
  %v531 = vrsqrt.pop %v523
  %v532 = vmul.f32 %v531, %v523
  %v533 = vmul.f32 %v532, %v531
  %v534 = vmul.f32 0.5, %v533
  %v535 = vsub.f32 1.5, %v534
  %v536 = vmul.f32 %v531, %v535
  %vm537 = vweird.f32 %v523
  %vm538 = vweird.f32 %v531
  %vm539 = vmor %vm537, %vm538
  %v540 = vsel %vm539, %v531, %v536
  %v541 = vrsqrt.pop %v526
  %v542 = vmul.f32 %v541, %v526
  %v543 = vmul.f32 %v542, %v541
  %v544 = vmul.f32 0.5, %v543
  %v545 = vsub.f32 1.5, %v544
  %v546 = vmul.f32 %v541, %v545
  %vm547 = vweird.f32 %v526
  %vm548 = vweird.f32 %v541
  %vm549 = vmor %vm547, %vm548
  %v550 = vsel %vm549, %v541, %v546
  %v551 = vrsqrt.pop %v529
  %v552 = vmul.f32 %v551, %v529
  %v553 = vmul.f32 %v552, %v551
  %v554 = vmul.f32 0.5, %v553
  %v555 = vsub.f32 1.5, %v554
  %v556 = vmul.f32 %v551, %v555
  %vm557 = vweird.f32 %v529
  %vm558 = vweird.f32 %v551
  %vm559 = vmor %vm557, %vm558
  %v560 = vsel %vm559, %v551, %v556
  %v561 = vmul.f32 %v490, %v540
  %v562 = vmul.f32 %v491, %v550
  %v563 = vmul.f32 %v492, %v560
  %v564 = vld [vmem:[%s9] sm:$0x1]
  %v566 = vperm.slane %v564, 0
  %v568 = vmul.f32 %v561, %v566
  %v569 = vmul.f32 %v562, %v566
  %v570 = vmul.f32 %v563, %v566
  %v571 = vld [vmem:[%s10] sm:$0x1]
  %v573 = vperm.slane %v571, 0
  %v575 = vadd.f32 %v568, %v573
  %v576 = vadd.f32 %v569, %v573
  %v577 = vadd.f32 %v570, %v573
  %vm578 = vcmp.ge.f32.partialorder %v575, 0.0
  %vm579 = vcmp.ge.f32.partialorder %v576, 0.0
  %vm580 = vcmp.ge.f32.partialorder %v577, 0.0
  %v581 = vmul.f32 %v575, 0.2
  %v582 = vmul.f32 %v576, 0.2
  %v583 = vmul.f32 %v577, 0.2
  %v584 = vsel %vm578, %v575, %v581
  %v585 = vsel %vm579, %v576, %v582
  %v586 = vsel %vm580, %v577, %v583
  %v587 = vadd.f32 %v41, %v584
  %v588 = vadd.f32 %v42, %v585
  %v589 = vadd.f32 %v43, %v586
  %590 = vst.msk [vmem:[%s12] sm:$0xff] %vm53, %v587
  %591 = vst.msk [vmem:[%s12 + $0x8] sm:$0xff] %vm53, %v588
  %592 = vst.msk [vmem:[%s12 + $0x10] sm:$0xff] %vm53, %v589
  // Predicated region
  $region50: #{res_res_embedding_mp_forward.5} parent=0 // pred_check
    _
  $region51: #{res_res_embedding_mp_forward.5} parent=0 // pred_check_branch
    %594 = sbr.rel (0) target = $region53
  $region52: #{res_res_embedding_mp_forward.5} parent=0 // pred_region
    _
  $region53: #{res_res_embedding_mp_forward.5} parent=0 // pred_fallthru
    _
  // Predicated region
  $region54: #{res_res_embedding_mp_forward.5} parent=0 // pred_check
    _
  $region55: #{res_res_embedding_mp_forward.5} parent=0 // pred_check_branch
    %596 = sbr.rel (0) target = $region57
  $region56: #{res_res_embedding_mp_forward.5} parent=0 // pred_region
    _
  $region57: #{res_res_embedding_mp_forward.5} parent=0 // pred_fallthru
    _

</llo_original>
